<compile_context>
chip_gen: v6e
topology: v6e:2x2x1
jax: 0.10.0
libtpu: 0.0.40
codegen_flags: <defaults>
</compile_context>

<pallas_src>
import functools

import jax
import jax.numpy as jnp
from jax import lax
from jax.experimental import pallas as pl
from jax.experimental.pallas import tpu as pltpu


def _criteria_kernel(adv_ref, org_ref, wk_ref, b_ref, wct_ref, out_ref,
                     *, nb, hw, k):
    wk = wk_ref[...]                                   # (K, C)  bf16
    wct = wct_ref[...]                                 # (K, NC) f32
    # Hoist the bias broadcast out of the per-sample loop (broadcast_in_dim is
    # not CSE'd by JAX) and reuse it for both adv and org conv results.
    bias = jnp.broadcast_to(b_ref[...], (k, hw))       # (K, HW) f32

    def class_weight(pooled_col):
        """pooled_col: (K, 1) f32 -> class weight vector (K, 1).

        Pure VPU mul + XLU reduces; avoids 1-wide MXU matmuls (full push/drain
        latency for almost no work) sitting between the big conv dots.
        """
        logits = jnp.sum(wct * pooled_col, axis=0, keepdims=True)    # (1, NC)
        mx = jnp.max(logits, axis=1, keepdims=True)                  # (1, 1)
        onehot = (logits == mx).astype(jnp.float32)
        onehot = onehot / jnp.sum(onehot, axis=1, keepdims=True)     # ties -> avg
        return jnp.sum(wct * onehot, axis=1, keepdims=True)          # (K, 1)

    def body(n, carry):
        sse_mask, sse_w = carry
        # Channel-major slabs: sublanes = channels, lanes = spatial (lane-dense).
        xa = adv_ref[n]                                # (C, HW) bf16
        xo = org_ref[n]                                # (C, HW) bf16

        feat_a = jnp.maximum(
            jnp.dot(wk, xa, preferred_element_type=jnp.float32) + bias, 0.0)   # (K, HW)
        feat_o = jnp.maximum(
            jnp.dot(wk, xo, preferred_element_type=jnp.float32) + bias, 0.0)   # (K, HW)

        # Global average pool over spatial (XLU lane reduce).
        pa = jnp.mean(feat_a, axis=1, keepdims=True)   # (K, 1)
        po = jnp.mean(feat_o, axis=1, keepdims=True)   # (K, 1)

        w_a = class_weight(pa)                         # (K, 1)
        w_o = class_weight(po)                         # (K, 1)

        # mask_adv - mask_org without materializing (HW, 1) slabs:
        #   = sum_k (w_a[k]*feat_a[k, :] - w_o[k]*feat_o[k, :])
        # (For K >> C this could be moved onto the MXU as (1,K)x(K,HW) dots;
        #  for typical CAM shapes the VPU path stays below the HBM roofline.)
        dmask = jnp.sum(w_a * feat_a - w_o * feat_o, axis=0, keepdims=True)    # (1, HW)
        dw = w_a - w_o                                                          # (K, 1)

        return (sse_mask + jnp.sum(dmask * dmask), sse_w + jnp.sum(dw * dw))

    init = (jnp.float32(0.0), jnp.float32(0.0))
    if nb <= 2:
        # Tiny trip count: full static unroll is fine.
        carry = init
        for n in range(nb):
            carry = body(n, carry)
        sse_mask, sse_w = carry
    else:
        # fori_loop bounds live ranges of the (K,HW) f32 feat slabs; unroll=2
        # keeps LLO scheduling visibility without blowing up vreg pressure.
        sse_mask, sse_w = lax.fori_loop(0, nb, body, init, unroll=2)

    # Lane-aligned (8, 128) partial row: [0, 0] = mask SSE, [0, 1] = weight SSE.
    lane = lax.broadcasted_iota(jnp.int32, (8, 128), 1)
    sub = lax.broadcasted_iota(jnp.int32, (8, 128), 0)
    row = jnp.where((sub == 0) & (lane == 0), sse_mask,
                    jnp.where((sub == 0) & (lane == 1), sse_w, 0.0))
    out_ref[0] = row


def _tpu_tuning():
    """Per-generation knobs: (min grid steps for the parallel batch axis,
    scoped-VMEM cap, target bytes for the double-buffered input blocks)."""
    kind = ""
    try:
        kind = jax.devices()[0].device_kind.lower()
    except Exception:
        pass
    if "v7" in kind:
        # 2 TensorCores/chip, only 64 MiB VMEM per TC: >=2 steps per TC for
        # pipelined overlap under megacore sharding, and a capped budget.
        return 4, 40 << 20, 10 << 20
    # v5e / v6e: single TC (grid is a serial loop), 128 MiB VMEM: fewer,
    # larger blocks; 2-3 steps is enough for DMA/compute overlap.
    return 2, 64 << 20, 16 << 20


def _pick_samples_per_block(n, per_sample_block_bytes, target_bytes, min_steps):
    """Largest divisor of n whose double-buffered input-block footprint stays
    under `target_bytes` while leaving at least `min_steps` grid steps."""
    min_steps = min(min_steps, n)
    best = 1
    for cand in range(1, n + 1):
        if n % cand != 0:
            continue
        if cand * per_sample_block_bytes > target_bytes:
            continue
        if n // cand < min_steps:
            continue
        best = cand
    return best


def cam_divide_criteria(adv_nchw, org_nchw, wconv, bconv, wc):
    """adv/org: (N, C, H, W). Returns (out1, out2) scalars (MSE of mask / weight)."""
    N, C, H, W = adv_nchw.shape
    HW = H * W
    K = wconv.shape[1]
    NC = wc.shape[0]

    # NCHW -> (N, C, HW): pure reshape, no HBM transpose.  Stream as bf16
    # (HBM-bandwidth bound kernel); compute stays f32 inside the kernel.
    adv = adv_nchw.reshape(N, C, HW).astype(jnp.bfloat16)
    org = org_nchw.reshape(N, C, HW).astype(jnp.bfloat16)
    wk = jnp.transpose(wconv).astype(jnp.bfloat16)        # (K, C)   tiny
    bcol = bconv.reshape(K, 1).astype(jnp.float32)        # (K, 1)
    wct = jnp.transpose(wc).astype(jnp.float32)           # (K, NC)

    min_steps, vmem_cap, target_in_bytes = _tpu_tuning()
    per_sample_in = 2 * C * HW * 2 * 2          # adv+org, bf16, double-buffered
    NB = _pick_samples_per_block(N, per_sample_in, target_in_bytes, min_steps)
    G = N // NB
    # TODO(synk): if a single sample's double-buffered block (plus feat temporaries)
    # exceeds the scoped-VMEM budget, an extra 'arbitrary' grid axis tiling HW (with
    # a two-pass GAP/argmax) is needed; not implemented here.

    # Budget the in-kernel temporaries: ~2-3 live (K,HW) f32 feat slabs per
    # adv/org pair with unroll=2, plus the double-buffered input blocks.
    feat_live_bytes = 3 * 2 * K * HW * 4
    vmem_limit = int(min(vmem_cap,
                         max(32 << 20, 2 * (NB * per_sample_in + feat_live_bytes))))

    kernel = functools.partial(_criteria_kernel, nb=NB, hw=HW, k=K)

    partials = pl.pallas_call(
        kernel,
        out_shape=jax.ShapeDtypeStruct((G, 8, 128), jnp.float32),
        grid_spec=pltpu.PrefetchScalarGridSpec(
            num_scalar_prefetch=0,
            grid=(G,),
            in_specs=[
                pl.BlockSpec((NB, C, HW), lambda b: (b, 0, 0)),
                pl.BlockSpec((NB, C, HW), lambda b: (b, 0, 0)),
                pl.BlockSpec((K, C), lambda b: (0, 0)),
                pl.BlockSpec((K, 1), lambda b: (0, 0)),
                pl.BlockSpec((K, NC), lambda b: (0, 0)),
            ],
            out_specs=pl.BlockSpec((1, 8, 128), lambda b: (b, 0, 0)),
        ),
        compiler_params=pltpu.CompilerParams(
            dimension_semantics=("parallel",),
            vmem_limit_bytes=vmem_limit),
    )(adv, org, wk, bcol, wct)

    # nn.MSELoss(reduction='mean'): mean over all elements.
    out1 = jnp.sum(partials[:, 0, 0]) / float(N * HW)   # mask has N*H*W elements
    out2 = jnp.sum(partials[:, 0, 1]) / float(N * K)    # weight has N*K elements
    return out1, out2


def _reference(adv_nchw, org_nchw, wconv, bconv, wc):
    """Pure-JAX reference with identical semantics (for sanity checking)."""
    N, C, H, W = adv_nchw.shape
    HW = H * W

    def cam(x_nchw):
        x = jnp.transpose(x_nchw, (0, 2, 3, 1)).reshape(N, HW, C)
        feat = jnp.maximum(
            jnp.einsum('nsc,ck->nsk', x, wconv, precision='highest')
            + bconv[None, None, :], 0.0)
        pooled = jnp.mean(feat, axis=1)
        logits = jnp.einsum('nk,ck->nc', pooled, wc, precision='highest')
        mx = jnp.max(logits, axis=-1, keepdims=True)
        onehot = (logits == mx).astype(jnp.float32)
        onehot = onehot / jnp.sum(onehot, axis=-1, keepdims=True)
        weight = jnp.einsum('nc,ck->nk', onehot, wc, precision='highest')
        mask = jnp.einsum('nsk,nk->ns', feat, weight, precision='highest')
        return mask, weight

    ma, wa = cam(adv_nchw)
    mo, wo = cam(org_nchw)
    return jnp.mean((ma - mo) ** 2), jnp.mean((wa - wo) ** 2)


def _round_bf16(x):
    return x.astype(jnp.bfloat16).astype(jnp.float32)


if __name__ == "__main__":
    key = jax.random.PRNGKey(0)
    k1, k2, k3, k4, k5 = jax.random.split(key, 5)

    # Small, module-consistent shapes.
    N, C, H, W = 2, 4, 16, 16      # input images (NCHW)
    K = 8                          # CAM feature channels
    NC = 8                         # number of classes

    org = jax.random.normal(k1, (N, C, H, W), dtype=jnp.float32)
    adv = org + 0.05 * jax.random.normal(k2, (N, C, H, W), dtype=jnp.float32)

    # Deterministic synthetic CAM parameters.
    wconv = 0.1 * jax.random.normal(k3, (C, K), dtype=jnp.float32)   # 1x1 conv weight
    bconv = 0.1 * jax.random.normal(k4, (K,), dtype=jnp.float32)     # 1x1 conv bias
    wc = 0.1 * jax.random.normal(k5, (NC, K), dtype=jnp.float32)     # classifier weight

    out1, out2 = cam_divide_criteria(adv, org, wconv, bconv, wc)
    out1, out2 = jax.block_until_ready((out1, out2))

    # Reference uses the same bf16-rounded streaming precision as the kernel.
    ref1, ref2 = _reference(_round_bf16(adv), _round_bf16(org),
                            _round_bf16(wconv), bconv, wc)
    assert jnp.allclose(out1, ref1, rtol=5e-4, atol=1e-6), (out1, ref1)
    assert jnp.allclose(out2, ref2, rtol=5e-4, atol=1e-6), (out2, ref2)

    print("KERNEL_OK")
</pallas_src>

<mosaic_0001>
module attributes {stable_mosaic.version = 11 : i64} {
  func.func @_criteria_kernel(%arg0: i32, %arg1: memref<1x4x256xbf16, #tpu.memory_space<vmem>>, %arg2: memref<1x4x256xbf16, #tpu.memory_space<vmem>>, %arg3: memref<8x4xbf16, #tpu.memory_space<vmem>>, %arg4: memref<8x1xf32, #tpu.memory_space<vmem>>, %arg5: memref<8x8xf32, #tpu.memory_space<vmem>>, %arg6: memref<1x8x128xf32, #tpu.memory_space<vmem>>) attributes {dimension_semantics = [#tpu.dimension_semantics<parallel>], iteration_bounds = array<i64: 2>, scalar_prefetch = 0 : i64, scratch_operands = 0 : i64, tpu.core_type = #tpu.core_type<tc>, window_params = [{transform_indices = @transform_0, window_bounds = array<i64: 1, 4, 256>}, {transform_indices = @transform_1, window_bounds = array<i64: 1, 4, 256>}, {pipeline_mode = #tpu.pipeline_mode<synchronous>, transform_indices = @transform_2, window_bounds = array<i64: 8, 4>}, {pipeline_mode = #tpu.pipeline_mode<synchronous>, transform_indices = @transform_3, window_bounds = array<i64: 8, 1>}, {pipeline_mode = #tpu.pipeline_mode<synchronous>, transform_indices = @transform_4, window_bounds = array<i64: 8, 8>}, {transform_indices = @transform_5, window_bounds = array<i64: 1, 8, 128>}]} {
    %c0 = arith.constant 0 : index
    %c0_0 = arith.constant 0 : index
    %0 = vector.load %arg3[%c0, %c0_0] : memref<8x4xbf16, #tpu.memory_space<vmem>>, vector<8x4xbf16>
    %c0_1 = arith.constant 0 : index
    %c0_2 = arith.constant 0 : index
    %1 = vector.load %arg5[%c0_1, %c0_2] : memref<8x8xf32, #tpu.memory_space<vmem>>, vector<8x8xf32>
    %c0_3 = arith.constant 0 : index
    %c0_4 = arith.constant 0 : index
    %2 = vector.load %arg4[%c0_3, %c0_4] : memref<8x1xf32, #tpu.memory_space<vmem>>, vector<8x1xf32>
    %3 = vector.shape_cast %2 : vector<8x1xf32> to vector<8x1xf32>
    %4 = vector.broadcast %3 : vector<8x1xf32> to vector<8x256xf32>
    %c0_5 = arith.constant 0 : index
    %c0_6 = arith.constant 0 : index
    %c0_7 = arith.constant 0 : index
    %5 = vector.load %arg1[%c0_5, %c0_6, %c0_7] : memref<1x4x256xbf16, #tpu.memory_space<vmem>>, vector<1x4x256xbf16>
    %6 = vector.shape_cast %5 : vector<1x4x256xbf16> to vector<4x256xbf16>
    %c0_8 = arith.constant 0 : index
    %c0_9 = arith.constant 0 : index
    %c0_10 = arith.constant 0 : index
    %7 = vector.load %arg2[%c0_8, %c0_9, %c0_10] : memref<1x4x256xbf16, #tpu.memory_space<vmem>>, vector<1x4x256xbf16>
    %8 = vector.shape_cast %7 : vector<1x4x256xbf16> to vector<4x256xbf16>
    %cst = arith.constant dense<0.000000e+00> : vector<8x256xf32>
    %9 = tpu.matmul %0, %6, %cst {dimension_numbers = #tpu.dot_dimension_numbers<[1], [0], [0], [1], [0, 0, 1, 1], [], []>} : vector<8x4xbf16>, vector<4x256xbf16>, vector<8x256xf32> -> vector<8x256xf32>
    %10 = arith.addf %9, %4 : vector<8x256xf32>
    %cst_11 = arith.constant 0.000000e+00 : f32
    %11 = vector.broadcast %cst_11 : f32 to vector<8x256xf32>
    %12 = arith.maximumf %10, %11 : vector<8x256xf32>
    %cst_12 = arith.constant dense<0.000000e+00> : vector<8x256xf32>
    %13 = tpu.matmul %0, %8, %cst_12 {dimension_numbers = #tpu.dot_dimension_numbers<[1], [0], [0], [1], [0, 0, 1, 1], [], []>} : vector<8x4xbf16>, vector<4x256xbf16>, vector<8x256xf32> -> vector<8x256xf32>
    %14 = arith.addf %13, %4 : vector<8x256xf32>
    %cst_13 = arith.constant 0.000000e+00 : f32
    %15 = vector.broadcast %cst_13 : f32 to vector<8x256xf32>
    %16 = arith.maximumf %14, %15 : vector<8x256xf32>
    %cst_14 = arith.constant dense<0.000000e+00> : vector<8xf32>
    %17 = vector.multi_reduction <add>, %12, %cst_14 [1] : vector<8x256xf32> to vector<8xf32>
    %18 = vector.shape_cast %17 : vector<8xf32> to vector<8x1xf32>
    %cst_15 = arith.constant 2.560000e+02 : f32
    %19 = vector.broadcast %cst_15 : f32 to vector<8x1xf32>
    %20 = arith.divf %18, %19 : vector<8x1xf32>
    %cst_16 = arith.constant dense<0.000000e+00> : vector<8xf32>
    %21 = vector.multi_reduction <add>, %16, %cst_16 [1] : vector<8x256xf32> to vector<8xf32>
    %22 = vector.shape_cast %21 : vector<8xf32> to vector<8x1xf32>
    %cst_17 = arith.constant 2.560000e+02 : f32
    %23 = vector.broadcast %cst_17 : f32 to vector<8x1xf32>
    %24 = arith.divf %22, %23 : vector<8x1xf32>
    %25 = vector.broadcast %20 : vector<8x1xf32> to vector<8x8xf32>
    %26 = arith.mulf %1, %25 : vector<8x8xf32>
    %cst_18 = arith.constant dense<0.000000e+00> : vector<8xf32>
    %27 = vector.multi_reduction <add>, %26, %cst_18 [0] : vector<8x8xf32> to vector<8xf32>
    %28 = vector.shape_cast %27 : vector<8xf32> to vector<1x8xf32>
    %cst_19 = arith.constant dense<0xFF800000> : vector<1xf32>
    %29 = vector.multi_reduction <maximumf>, %28, %cst_19 [1] : vector<1x8xf32> to vector<1xf32>
    %30 = vector.shape_cast %29 : vector<1xf32> to vector<1x1xf32>
    %31 = vector.broadcast %30 : vector<1x1xf32> to vector<1x8xf32>
    %32 = arith.cmpf oeq, %28, %31 : vector<1x8xf32>
    %33 = arith.extui %32 : vector<1x8xi1> to vector<1x8xi32>
    %34 = arith.sitofp %33 : vector<1x8xi32> to vector<1x8xf32>
    %cst_20 = arith.constant dense<0.000000e+00> : vector<1xf32>
    %35 = vector.multi_reduction <add>, %34, %cst_20 [1] : vector<1x8xf32> to vector<1xf32>
    %36 = vector.shape_cast %35 : vector<1xf32> to vector<1x1xf32>
    %37 = vector.broadcast %36 : vector<1x1xf32> to vector<1x8xf32>
    %38 = arith.divf %34, %37 : vector<1x8xf32>
    %39 = vector.broadcast %38 : vector<1x8xf32> to vector<8x8xf32>
    %40 = arith.mulf %1, %39 : vector<8x8xf32>
    %cst_21 = arith.constant dense<0.000000e+00> : vector<8xf32>
    %41 = vector.multi_reduction <add>, %40, %cst_21 [1] : vector<8x8xf32> to vector<8xf32>
    %42 = vector.shape_cast %41 : vector<8xf32> to vector<8x1xf32>
    %43 = vector.broadcast %24 : vector<8x1xf32> to vector<8x8xf32>
    %44 = arith.mulf %1, %43 : vector<8x8xf32>
    %cst_22 = arith.constant dense<0.000000e+00> : vector<8xf32>
    %45 = vector.multi_reduction <add>, %44, %cst_22 [0] : vector<8x8xf32> to vector<8xf32>
    %46 = vector.shape_cast %45 : vector<8xf32> to vector<1x8xf32>
    %cst_23 = arith.constant dense<0xFF800000> : vector<1xf32>
    %47 = vector.multi_reduction <maximumf>, %46, %cst_23 [1] : vector<1x8xf32> to vector<1xf32>
    %48 = vector.shape_cast %47 : vector<1xf32> to vector<1x1xf32>
    %49 = vector.broadcast %48 : vector<1x1xf32> to vector<1x8xf32>
    %50 = arith.cmpf oeq, %46, %49 : vector<1x8xf32>
    %51 = arith.extui %50 : vector<1x8xi1> to vector<1x8xi32>
    %52 = arith.sitofp %51 : vector<1x8xi32> to vector<1x8xf32>
    %cst_24 = arith.constant dense<0.000000e+00> : vector<1xf32>
    %53 = vector.multi_reduction <add>, %52, %cst_24 [1] : vector<1x8xf32> to vector<1xf32>
    %54 = vector.shape_cast %53 : vector<1xf32> to vector<1x1xf32>
    %55 = vector.broadcast %54 : vector<1x1xf32> to vector<1x8xf32>
    %56 = arith.divf %52, %55 : vector<1x8xf32>
    %57 = vector.broadcast %56 : vector<1x8xf32> to vector<8x8xf32>
    %58 = arith.mulf %1, %57 : vector<8x8xf32>
    %cst_25 = arith.constant dense<0.000000e+00> : vector<8xf32>
    %59 = vector.multi_reduction <add>, %58, %cst_25 [1] : vector<8x8xf32> to vector<8xf32>
    %60 = vector.shape_cast %59 : vector<8xf32> to vector<8x1xf32>
    %61 = vector.broadcast %42 : vector<8x1xf32> to vector<8x256xf32>
    %62 = arith.mulf %61, %12 : vector<8x256xf32>
    %63 = vector.broadcast %60 : vector<8x1xf32> to vector<8x256xf32>
    %64 = arith.mulf %63, %16 : vector<8x256xf32>
    %65 = arith.subf %62, %64 : vector<8x256xf32>
    %cst_26 = arith.constant dense<0.000000e+00> : vector<256xf32>
    %66 = vector.multi_reduction <add>, %65, %cst_26 [0] : vector<8x256xf32> to vector<256xf32>
    %67 = vector.shape_cast %66 : vector<256xf32> to vector<1x256xf32>
    %68 = arith.subf %42, %60 : vector<8x1xf32>
    %69 = arith.mulf %67, %67 : vector<1x256xf32>
    %70 = vector.shape_cast %69 : vector<1x256xf32> to vector<1x1x256xf32>
    %cst_27 = arith.constant dense<0.000000e+00> : vector<1xf32>
    %71 = vector.multi_reduction <add>, %70, %cst_27 [1, 2] : vector<1x1x256xf32> to vector<1xf32>
    %72 = vector.shape_cast %71 : vector<1xf32> to vector<1x1x1xf32>
    %73 = vector.extract %72[0, 0, 0] : f32 from vector<1x1x1xf32>
    %cst_28 = arith.constant 0.000000e+00 : f32
    %74 = arith.addf %cst_28, %73 : f32
    %75 = arith.mulf %68, %68 : vector<8x1xf32>
    %76 = vector.shape_cast %75 : vector<8x1xf32> to vector<1x8x1xf32>
    %cst_29 = arith.constant dense<0.000000e+00> : vector<1xf32>
    %77 = vector.multi_reduction <add>, %76, %cst_29 [1, 2] : vector<1x8x1xf32> to vector<1xf32>
    %78 = vector.shape_cast %77 : vector<1xf32> to vector<1x1x1xf32>
    %79 = vector.extract %78[0, 0, 0] : f32 from vector<1x1x1xf32>
    %cst_30 = arith.constant 0.000000e+00 : f32
    %80 = arith.addf %cst_30, %79 : f32
    %81 = tpu.iota {dimensions = array<i32: 1>} : vector<8x128xi32>
    %82 = tpu.iota {dimensions = array<i32: 0>} : vector<8x128xi32>
    %c0_i32 = arith.constant 0 : i32
    %83 = vector.broadcast %c0_i32 : i32 to vector<8x128xi32>
    %84 = arith.cmpi eq, %82, %83 : vector<8x128xi32>
    %c0_i32_31 = arith.constant 0 : i32
    %85 = vector.broadcast %c0_i32_31 : i32 to vector<8x128xi32>
    %86 = arith.cmpi eq, %81, %85 : vector<8x128xi32>
    %87 = arith.andi %84, %86 : vector<8x128xi1>
    %c0_i32_32 = arith.constant 0 : i32
    %88 = vector.broadcast %c0_i32_32 : i32 to vector<8x128xi32>
    %89 = arith.cmpi eq, %82, %88 : vector<8x128xi32>
    %c1_i32 = arith.constant 1 : i32
    %90 = vector.broadcast %c1_i32 : i32 to vector<8x128xi32>
    %91 = arith.cmpi eq, %81, %90 : vector<8x128xi32>
    %92 = arith.andi %89, %91 : vector<8x128xi1>
    %cst_33 = arith.constant 0.000000e+00 : f32
    %93 = vector.broadcast %80 : f32 to vector<8x128xf32>
    %94 = vector.broadcast %cst_33 : f32 to vector<8x128xf32>
    %95 = arith.select %92, %93, %94 : vector<8x128xi1>, vector<8x128xf32>
    %96 = vector.broadcast %74 : f32 to vector<8x128xf32>
    %97 = arith.select %87, %96, %95 : vector<8x128xi1>, vector<8x128xf32>
    %c0_34 = arith.constant 0 : index
    %c0_35 = arith.constant 0 : index
    %c0_36 = arith.constant 0 : index
    %98 = vector.load %arg6[%c0_34, %c0_35, %c0_36] : memref<1x8x128xf32, #tpu.memory_space<vmem>>, vector<1x8x128xf32>
    %99 = vector.shape_cast %98 : vector<1x8x128xf32> to vector<8x128xf32>
    %100 = vector.shape_cast %97 : vector<8x128xf32> to vector<1x8x128xf32>
    tpu.vector_store %arg6[%c0_34, %c0_35, %c0_36], %100 {strides = array<i32>} : memref<1x8x128xf32, #tpu.memory_space<vmem>>, vector<1x8x128xf32>,
    return
  }
  func.func @transform_0(%arg0: i32) -> (i32, i32, i32) {
    %c0_i32 = arith.constant 0 : i32
    %c0_i32_0 = arith.constant 0 : i32
    %c0_i32_1 = arith.constant 0 : i32
    return %arg0, %c0_i32, %c0_i32_0 : i32, i32, i32
  }
  func.func @transform_1(%arg0: i32) -> (i32, i32, i32) {
    %c0_i32 = arith.constant 0 : i32
    %c0_i32_0 = arith.constant 0 : i32
    %c0_i32_1 = arith.constant 0 : i32
    return %arg0, %c0_i32, %c0_i32_0 : i32, i32, i32
  }
  func.func @transform_2(%arg0: i32) -> (i32, i32) {
    %c0_i32 = arith.constant 0 : i32
    %c0_i32_0 = arith.constant 0 : i32
    %c0_i32_1 = arith.constant 0 : i32
    return %c0_i32, %c0_i32_0 : i32, i32
  }
  func.func @transform_3(%arg0: i32) -> (i32, i32) {
    %c0_i32 = arith.constant 0 : i32
    %c0_i32_0 = arith.constant 0 : i32
    %c0_i32_1 = arith.constant 0 : i32
    return %c0_i32, %c0_i32_0 : i32, i32
  }
  func.func @transform_4(%arg0: i32) -> (i32, i32) {
    %c0_i32 = arith.constant 0 : i32
    %c0_i32_0 = arith.constant 0 : i32
    %c0_i32_1 = arith.constant 0 : i32
    return %c0_i32, %c0_i32_0 : i32, i32
  }
  func.func @transform_5(%arg0: i32) -> (i32, i32, i32) {
    %c0_i32 = arith.constant 0 : i32
    %c0_i32_0 = arith.constant 0 : i32
    %c0_i32_1 = arith.constant 0 : i32
    return %arg0, %c0_i32, %c0_i32_0 : i32, i32, i32
  }
}

</mosaic_0001>

<llo_original>
// kernel: tpu_custom_call.1
$region0: #{tpu_custom_call.1}
  #allocation0 [shape = 'u32[]', space=smem, size = 0x4, offset = 0x4, fixed_abs, tag = 'smem constant byte address 0x4 - core index']
  #allocation1 [shape = 'u32[144,128]{1,0:T(1,128)}', space=vmem, size = 0x12000, scoped, tag = 'internal scratch']
  %s0 = inlined_call_operand.vmem [shape: bf16[2,4,256], index: 0, kind: input, shape index: {}]
  %s1 = inlined_call_operand.vmem [shape: bf16[2,4,256], index: 1, kind: input, shape index: {}]
  %s2 = inlined_call_operand.vmem [shape: bf16[8,4], index: 2, kind: input, shape index: {}]
  %s3 = inlined_call_operand.vmem [shape: f32[8,1], index: 3, kind: input, shape index: {}]
  %s4 = inlined_call_operand.hbm [shape: f32[8,8], index: 4, kind: input, shape index: {}]
  %s5 = inlined_call_operand.hbm [shape: f32[2,8,128], index: 5, kind: output, shape index: {}]
  %s6 = sld [smem:[#allocation0]]
  $region57: #{tpu_custom_call.1} parent=0
    _
  %s8 = ssub.s32 1, %s6
  %s9 = scalar_select 0, %s8, %s6
  $region1: #{tpu_custom_call.1} parent=0
    #allocation2 [shape = 'u8[4096]{0}', space=vmem, size = 0x1000, scoped, tag = 'input window, operand 4, single buffered']
    #allocation3 [shape = 's32[2]{0}', space=sflag, size = 0x8, scoped, tag = 'scoped memory for tpu_custom_call.1']
    #allocation4 [shape = 's32[2]{0}', space=sflag, size = 0x8, scoped, tag = 'scoped memory for tpu_custom_call.1']
    #allocation5 [shape = 'u8[8192]{0}', space=vmem, size = 0x2000, scoped, tag = 'output window, operand 0']
    %10 = vsyncpa [#allocation3], 0
    %11 = vsyncpa [#allocation4], 0
    %s12 = scalar_lea.sflag [#allocation4], 1
    %13 = vsyncpa %s12, 0
    loop: start=0, step=1, limit=4
    $region2: #{tpu_custom_call.1} parent=1 // loop_pre_header
      _
    $region3: #{tpu_custom_call.1} parent=1 // loop_header
      %s15 = sphi 0, %s19
      %p16 = scmp.ge.s32.totalorder %s15, 4
      %s25 = sphi 0, %s27
      %s28 = sphi 0, %s25
      %s29 = sphi 0, %s28
      %s45 = sphi 0, %s29
      %s51 = sphi 0, %s53
      %s54 = sphi 0, %s51
      %s55 = sphi 0, %s54
      %s71 = sphi 0, %s55
      %s75 = sphi 0, %s75
      %s77 = sphi 0, %s75
      %s78 = sphi 0, %s77
      %s92 = sphi 0, %s78
      %s96 = sphi 0, %s96
      %s98 = sphi 0, %s96
      %s99 = sphi 0, %s98
      %s113 = sphi 0, %s99
      %s117 = sphi 0, %s117
      %s119 = sphi 0, %s117
      %s120 = sphi 0, %s119
      %s134 = sphi 0, %s120
      %s140 = sphi 0, %s142
      %s143 = sphi 0, %s140
      %s144 = sphi 0, %s143
      %s160 = sphi 0, %s144
    $region4: #{tpu_custom_call.1} parent=1 // loop_header_branch
      %18 = sbr.rel (%p16) target = $region8
    $region5: #{tpu_custom_call.1} parent=1 // loop_body
      %s20 = ssub.s32 %s15, 1
      %s21 = ssub.s32 %s15, 2
      %s22 = sadd.s32 %s15, 1
      %s23 = ssub.s32 %s15, %s22
      %p24 = scmp.eq.s32.totalorder %s23, 0
      %s26 = sadd.s32 %s25, 1
      %s27 = scalar_select %p24, %s25, %s26
      %p30 = pneg %p24
      %p31 = scmp.eq.s32.totalorder %s15, 1
      %p32 = por %p30, %p31
      %p33 = scmp.ne.s32.totalorder %s25, %s28
      %p34 = scmp.eq.s32.totalorder %s15, 0
      %p35 = por %p33, %p34
      %p36 = scmp.ne.s32.totalorder %s25, %s28
      %p37 = scmp.eq.s32.totalorder %s20, 1
      %p38 = por %p36, %p37
      %p39 = scmp.ne.s32.totalorder %s28, %s29
      %p40 = scmp.eq.s32.totalorder %s20, 0
      %p41 = por %p39, %p40
      %p42 = scmp.ne.s32.totalorder %s28, %s29
      %p43 = scmp.eq.s32.totalorder %s21, 1
      %p44 = por %p42, %p43
      %p46 = scmp.ne.s32.totalorder %s29, %s45
      %p47 = scmp.eq.s32.totalorder %s21, 0
      %p48 = por %p46, %p47
      %s49 = ssub.s32 %s15, %s22
      %p50 = scmp.eq.s32.totalorder %s49, 0
      %s52 = sadd.s32 %s51, 1
      %s53 = scalar_select %p50, %s51, %s52
      %p56 = pneg %p50
      %p57 = scmp.eq.s32.totalorder %s15, 1
      %p58 = por %p56, %p57
      %p59 = scmp.ne.s32.totalorder %s51, %s54
      %p60 = scmp.eq.s32.totalorder %s15, 0
      %p61 = por %p59, %p60
      %p62 = scmp.ne.s32.totalorder %s51, %s54
      %p63 = scmp.eq.s32.totalorder %s20, 1
      %p64 = por %p62, %p63
      %p65 = scmp.ne.s32.totalorder %s54, %s55
      %p66 = scmp.eq.s32.totalorder %s20, 0
      %p67 = por %p65, %p66
      %p68 = scmp.ne.s32.totalorder %s54, %s55
      %p69 = scmp.eq.s32.totalorder %s21, 1
      %p70 = por %p68, %p69
      %p72 = scmp.ne.s32.totalorder %s55, %s71
      %p73 = scmp.eq.s32.totalorder %s21, 0
      %p74 = por %p72, %p73
      %s76 = sadd.s32 %s75, 1
      %p79 = scmp.eq.s32.totalorder %s15, 1
      %p80 = scmp.ne.s32.totalorder %s75, %s77
      %p81 = scmp.eq.s32.totalorder %s15, 0
      %p82 = por %p80, %p81
      %p83 = scmp.ne.s32.totalorder %s75, %s77
      %p84 = scmp.eq.s32.totalorder %s20, 1
      %p85 = por %p83, %p84
      %p86 = scmp.ne.s32.totalorder %s77, %s78
      %p87 = scmp.eq.s32.totalorder %s20, 0
      %p88 = por %p86, %p87
      %p89 = scmp.ne.s32.totalorder %s77, %s78
      %p90 = scmp.eq.s32.totalorder %s21, 1
      %p91 = por %p89, %p90
      %p93 = scmp.ne.s32.totalorder %s78, %s92
      %p94 = scmp.eq.s32.totalorder %s21, 0
      %p95 = por %p93, %p94
      %s97 = sadd.s32 %s96, 1
      %p100 = scmp.eq.s32.totalorder %s15, 1
      %p101 = scmp.ne.s32.totalorder %s96, %s98
      %p102 = scmp.eq.s32.totalorder %s15, 0
      %p103 = por %p101, %p102
      %p104 = scmp.ne.s32.totalorder %s96, %s98
      %p105 = scmp.eq.s32.totalorder %s20, 1
      %p106 = por %p104, %p105
      %p107 = scmp.ne.s32.totalorder %s98, %s99
      %p108 = scmp.eq.s32.totalorder %s20, 0
      %p109 = por %p107, %p108
      %p110 = scmp.ne.s32.totalorder %s98, %s99
      %p111 = scmp.eq.s32.totalorder %s21, 1
      %p112 = por %p110, %p111
      %p114 = scmp.ne.s32.totalorder %s99, %s113
      %p115 = scmp.eq.s32.totalorder %s21, 0
      %p116 = por %p114, %p115
      %s118 = sadd.s32 %s117, 1
      %p121 = scmp.eq.s32.totalorder %s15, 1
      %p122 = scmp.ne.s32.totalorder %s117, %s119
      %p123 = scmp.eq.s32.totalorder %s15, 0
      %p124 = por %p122, %p123
      %p125 = scmp.ne.s32.totalorder %s117, %s119
      %p126 = scmp.eq.s32.totalorder %s20, 1
      %p127 = por %p125, %p126
      %p128 = scmp.ne.s32.totalorder %s119, %s120
      %p129 = scmp.eq.s32.totalorder %s20, 0
      %p130 = por %p128, %p129
      %p131 = scmp.ne.s32.totalorder %s119, %s120
      %p132 = scmp.eq.s32.totalorder %s21, 1
      %p133 = por %p131, %p132
      %p135 = scmp.ne.s32.totalorder %s120, %s134
      %p136 = scmp.eq.s32.totalorder %s21, 0
      %p137 = por %p135, %p136
      %s138 = ssub.s32 %s15, %s22
      %p139 = scmp.eq.s32.totalorder %s138, 0
      %s141 = sadd.s32 %s140, 1
      %s142 = scalar_select %p139, %s140, %s141
      %p145 = pneg %p139
      %p146 = scmp.eq.s32.totalorder %s15, 1
      %p147 = por %p145, %p146
      %p148 = scmp.ne.s32.totalorder %s140, %s143
      %p149 = scmp.eq.s32.totalorder %s15, 0
      %p150 = por %p148, %p149
      %p151 = scmp.ne.s32.totalorder %s140, %s143
      %p152 = scmp.eq.s32.totalorder %s20, 1
      %p153 = por %p151, %p152
      %p154 = scmp.ne.s32.totalorder %s143, %s144
      %p155 = scmp.eq.s32.totalorder %s20, 0
      %p156 = por %p154, %p155
      %p157 = scmp.ne.s32.totalorder %s143, %s144
      %p158 = scmp.eq.s32.totalorder %s21, 1
      %p159 = por %p157, %p158
      %p161 = scmp.ne.s32.totalorder %s144, %s160
      %p162 = scmp.eq.s32.totalorder %s21, 0
      %p163 = por %p161, %p162
      %p164 = scmp.le.s32.totalorder 1, %s15
      %p165 = scmp.lt.s32.totalorder %s15, 3
      %p166 = pnand %p164, %p165
      %p167 = pneg %p166
      // Predicated region
      $region9: #{tpu_custom_call.1} parent=5 // pred_check
        _
      $region10: #{tpu_custom_call.1} parent=5 // pred_check_branch
        %169 = sbr.rel (%p166) target = $region12
      $region11: #{tpu_custom_call.1} parent=5 // pred_region
        %s170 = ssub.s32 %s15, 1
        // Predicated region
        $region13: #{tpu_custom_call.1} parent=11 // pred_check
          %p171 = pneg %p88
        $region14: #{tpu_custom_call.1} parent=11 // pred_check_branch
          %173 = sbr.rel (%p171) target = $region16
        $region15: #{tpu_custom_call.1} parent=11 // pred_region
          _
        $region16: #{tpu_custom_call.1} parent=11 // pred_fallthru
          _
        // Predicated region
        $region17: #{tpu_custom_call.1} parent=11 // pred_check
          %p174 = pneg %p109
        $region18: #{tpu_custom_call.1} parent=11 // pred_check_branch
          %176 = sbr.rel (%p174) target = $region20
        $region19: #{tpu_custom_call.1} parent=11 // pred_region
          _
        $region20: #{tpu_custom_call.1} parent=11 // pred_fallthru
          _
        // Predicated region
        $region21: #{tpu_custom_call.1} parent=11 // pred_check
          %p177 = pneg %p130
        $region22: #{tpu_custom_call.1} parent=11 // pred_check_branch
          %179 = sbr.rel (%p177) target = $region24
        $region23: #{tpu_custom_call.1} parent=11 // pred_region
          %s181 = ssub.s32 128, 128
          %182 = vsyncadd [#allocation3], %s181
          %s184 = sshll.u32 [#allocation2], 4
          %s185 = int_to_ptr.vmem [resolvable:$true] %s184
          %187 = dma.hbm_to_vmem [thread:$0]  %s4, 128, %s185, [#allocation3]
        $region24: #{tpu_custom_call.1} parent=11 // pred_fallthru
          _
      $region12: #{tpu_custom_call.1} parent=5 // pred_fallthru
        _
      %p188 = scmp.lt.s32.totalorder %s15, 2
      // Predicated region
      $region25: #{tpu_custom_call.1} parent=5 // pred_check
        %p189 = pneg %p188
      $region26: #{tpu_custom_call.1} parent=5 // pred_check_branch
        %191 = sbr.rel (%p189) target = $region28
      $region27: #{tpu_custom_call.1} parent=5 // pred_region
        // Predicated region
        $region29: #{tpu_custom_call.1} parent=27 // pred_check
          %p192 = pneg %p35
        $region30: #{tpu_custom_call.1} parent=27 // pred_check_branch
          %194 = sbr.rel (%p192) target = $region32
        $region31: #{tpu_custom_call.1} parent=27 // pred_region
          %p195 = scmp.lt.s32.totalorder %s15, 1
          %s196 = scalar_select %p195, %s15, 1
          %s197 = smul.addr %s196, 2
          %s198 = smul.addr %s197, 2
          %s199 = scalar_lea.vmem %s0, %s198
        $region32: #{tpu_custom_call.1} parent=27 // pred_fallthru
          _
        // Predicated region
        $region33: #{tpu_custom_call.1} parent=27 // pred_check
          %p200 = pneg %p61
        $region34: #{tpu_custom_call.1} parent=27 // pred_check_branch
          %202 = sbr.rel (%p200) target = $region36
        $region35: #{tpu_custom_call.1} parent=27 // pred_region
          %p203 = scmp.lt.s32.totalorder %s15, 1
          %s204 = scalar_select %p203, %s15, 1
          %s205 = smul.addr %s204, 2
          %s206 = smul.addr %s205, 2
          %s207 = scalar_lea.vmem %s1, %s206
        $region36: #{tpu_custom_call.1} parent=27 // pred_fallthru
          _
      $region28: #{tpu_custom_call.1} parent=5 // pred_fallthru
        _
      %p208 = scmp.le.s32.totalorder 1, %s15
      %p209 = scmp.lt.s32.totalorder %s15, 3
      %p210 = pnand %p208, %p209
      %p211 = pneg %p210
      // Predicated region
      $region37: #{tpu_custom_call.1} parent=5 // pred_check
        _
      $region38: #{tpu_custom_call.1} parent=5 // pred_check_branch
        %213 = sbr.rel (%p210) target = $region40
      $region39: #{tpu_custom_call.1} parent=5 // pred_region
        %s214 = ssub.s32 %s15, 1
        // Predicated region
        $region41: #{tpu_custom_call.1} parent=39 // pred_check
          %p215 = pneg %p130
        $region42: #{tpu_custom_call.1} parent=39 // pred_check_branch
          %217 = sbr.rel (%p215) target = $region44
        $region43: #{tpu_custom_call.1} parent=39 // pred_region
          %218 = dma.done [#allocation3], 128
        $region44: #{tpu_custom_call.1} parent=39 // pred_fallthru
          _
        %p219 = scmp.lt.s32.totalorder %s20, 1
        %s220 = scalar_select %p219, %s20, 1
        %s221 = smul.addr %s220, 2
        %s222 = smul.addr %s221, 2
        %s223 = scalar_lea.vmem %s0, %s222
        %p224 = pneg %p41
        %p225 = pneg %p38
        %p226 = scmp.lt.s32.totalorder %s20, 1
        %s227 = scalar_select %p226, %s20, 1
        %s228 = smul.addr %s227, 2
        %s229 = smul.addr %s228, 2
        %s230 = scalar_lea.vmem %s1, %s229
        %p231 = pneg %p67
        %p232 = pneg %p64
        %p233 = pneg %p88
        %p234 = pneg %p85
        %p235 = pneg %p109
        %p236 = pneg %p106
        %p237 = pneg %p130
        %p238 = pneg %p127
        %p239 = pneg %p156
        %p240 = pneg %p153
        %s241 = sand.u32 %s143, 1
        %s242 = scalar_lea.sflag [#allocation4], %s241
        %s243 = sand.u32 %s143, 1
        %s244 = smul.addr %s243, 8
        %s245 = scalar_lea.vmem [#allocation5], %s244
        %p246 = scmp.lt.s32.totalorder %s20, 1
        %s247 = scalar_select %p246, %s20, 1
        %s248 = smul.addr %s247, 2
        %s249 = smul.addr %s248, 2
        %s250 = scalar_lea.vmem %s0, %s249
        %p251 = scmp.lt.s32.totalorder %s20, 1
        %s252 = scalar_select %p251, %s20, 1
        %s253 = smul.addr %s252, 2
        %s254 = smul.addr %s253, 2
        %s255 = scalar_lea.vmem %s1, %s254
        %v257 = vld [vmem:[%s2] sm:$0xf]
        %v258 = vld [vmem:[#allocation2] sm:$0xff]
        %v259 = vld [vmem:[%s3] sm:$0xff]
        %261 = vset.pattern.permute.xlu0 0
        %262 = vperm.xlu0 %261, %v259
        %v263 = vpop.permute.xlu0 %262
        %v265 = vld [vmem:[%s250] sm:$0xf]
        %v266 = vld [vmem:[%s255] sm:$0xf]
        %v269 = vunpack.c.l.s4 1983009808
        %v270 = vunpack.c.0.s8 %v269
        %v271 = vlaneseq
        %v272 = vshrl.u32 %v271, 7
        %v273 = vsub.s32 %v270, %v272
        %v274 = vrot.slane %v265, %v273
        %v275 = vcombine.high %v274, %v274
        %vm276 = vcmask 31744
        %v278 = vsel %vm276, %v257, 0
        %vm280 = vcmask 1041408
        %v282 = vsel %vm280, %v274, 0
        %v285 = vsel %vm280, %v275, 0
        %287 = vmatprep.subr.bf16.mxu0 0
        %288 = vmatpush1.bf16.msra.mxu0 0
        %289 = vmatprep.subr.bf16.mxu0 0
        %290 = vmatpush1.bf16.msra.mxu0 0
        %291 = vmatprep.subr.bf16.mxu0 0
        %292 = vmatpush1.bf16.msra.mxu0 0
        %293 = vmatprep.subr.bf16.mxu0 0
        %294 = vmatpush1.bf16.msra.mxu0 0
        %295 = vmatprep.subr.bf16.mxu0 0
        %296 = vmatpush1.bf16.msra.mxu0 0
        %297 = vmatprep.subr.bf16.mxu0 0
        %298 = vmatpush1.bf16.msra.mxu0 0
        %299 = vmatprep.subr.bf16.mxu0 0
        %300 = vmatpush1.bf16.msra.mxu0 0
        %301 = vmatprep.subr.bf16.mxu0 %v285
        %302 = vmatpush1.bf16.msra.mxu0 %v282
        %303 = vmatprep.subr.bf16.mxu0 0
        %304 = vmatpush2.bf16.msra.mxu0 0
        %305 = vmatprep.subr.bf16.mxu0 0
        %306 = vmatpush2.bf16.msra.mxu0 0
        %307 = vmatprep.subr.bf16.mxu0 0
        %308 = vmatpush2.bf16.msra.mxu0 0
        %309 = vmatprep.subr.bf16.mxu0 0
        %310 = vmatpush2.bf16.msra.mxu0 0
        %311 = vmatprep.subr.bf16.mxu0 0
        %312 = vmatpush2.bf16.msra.mxu0 0
        %313 = vmatprep.subr.bf16.mxu0 0
        %314 = vmatpush2.bf16.msra.mxu0 0
        %315 = vmatprep.subr.bf16.mxu0 0
        %316 = vmatpush2.bf16.msra.mxu0 0
        %317 = vmatprep.subr.bf16.mxu0 0
        %318 = vmatpush2.bf16.msra.mxu0 0
        %319 = vmatprep.mubr.bf16.mxu0 0
        %320 = vmatmul.mubr.bf16.gmra.mxu0 %v278
        %v321 = vpop.f32.mrf.mxu0
        %v322 = vadd.f32 %v263, %v321
        %v323 = vpop.f32.mrf.mxu0
        %v324 = vadd.f32 %v263, %v323
        %v325 = vpop.f32.mrf.mxu0
        %v326 = vpop.f32.mrf.mxu0
        %327 = vdwg.mxu0
        %v328 = vmax.f32 %v322, 0.0
        %v329 = vmax.f32 %v324, 0.0
        %v332 = vunpack.c.l.s4 1983009808
        %v333 = vunpack.c.0.s8 %v332
        %v334 = vlaneseq
        %v335 = vshrl.u32 %v334, 7
        %v336 = vsub.s32 %v333, %v335
        %v337 = vrot.slane %v266, %v336
        %v338 = vcombine.high %v337, %v337
        %v340 = vsel %vm280, %v337, 0
        %v343 = vsel %vm280, %v338, 0
        %345 = vmatprep.subr.bf16.mxu0 0
        %346 = vmatpush1.bf16.msra.mxu0 0
        %347 = vmatprep.subr.bf16.mxu0 0
        %348 = vmatpush1.bf16.msra.mxu0 0
        %349 = vmatprep.subr.bf16.mxu0 0
        %350 = vmatpush1.bf16.msra.mxu0 0
        %351 = vmatprep.subr.bf16.mxu0 0
        %352 = vmatpush1.bf16.msra.mxu0 0
        %353 = vmatprep.subr.bf16.mxu0 0
        %354 = vmatpush1.bf16.msra.mxu0 0
        %355 = vmatprep.subr.bf16.mxu0 0
        %356 = vmatpush1.bf16.msra.mxu0 0
        %357 = vmatprep.subr.bf16.mxu0 0
        %358 = vmatpush1.bf16.msra.mxu0 0
        %359 = vmatprep.subr.bf16.mxu0 %v343
        %360 = vmatpush1.bf16.msra.mxu0 %v340
        %361 = vmatprep.subr.bf16.mxu0 0
        %362 = vmatpush2.bf16.msra.mxu0 0
        %363 = vmatprep.subr.bf16.mxu0 0
        %364 = vmatpush2.bf16.msra.mxu0 0
        %365 = vmatprep.subr.bf16.mxu0 0
        %366 = vmatpush2.bf16.msra.mxu0 0
        %367 = vmatprep.subr.bf16.mxu0 0
        %368 = vmatpush2.bf16.msra.mxu0 0
        %369 = vmatprep.subr.bf16.mxu0 0
        %370 = vmatpush2.bf16.msra.mxu0 0
        %371 = vmatprep.subr.bf16.mxu0 0
        %372 = vmatpush2.bf16.msra.mxu0 0
        %373 = vmatprep.subr.bf16.mxu0 0
        %374 = vmatpush2.bf16.msra.mxu0 0
        %375 = vmatprep.subr.bf16.mxu0 0
        %376 = vmatpush2.bf16.msra.mxu0 0
        %377 = vmatprep.mubr.bf16.mxu0 0
        %378 = vmatmul.mubr.bf16.gmra.mxu0 %v278
        %v379 = vpop.f32.mrf.mxu0
        %v380 = vadd.f32 %v263, %v379
        %v381 = vpop.f32.mrf.mxu0
        %v382 = vadd.f32 %v263, %v381
        %v383 = vpop.f32.mrf.mxu0
        %v384 = vpop.f32.mrf.mxu0
        %385 = vdwg.mxu0
        %v386 = vmax.f32 %v380, 0.0
        %v387 = vmax.f32 %v382, 0.0
        %v388 = vadd.f32 %v328, %v329
        %389 = vadd.xlane.f32.xlu0 %v388
        %v390 = vpop.xlane.xlu0 %389
        %v391 = vrcp.pop 256.0
        %v392 = vmul.f32 %v390, %v391
        %v393 = vadd.f32 %v386, %v387
        %394 = vadd.xlane.f32.xlu0 %v393
        %v395 = vpop.xlane.xlu0 %394
        %v396 = vmul.f32 %v395, %v391
        %v397 = vmul.f32 %v258, %v392
        %vm398 = vcmask 64512
        %v399 = vsel %vm398, %v397, 0.0
        %v400 = vrot.slane %v399, 4
        %v401 = vadd.f32 %v399, %v400
        %v402 = vrot.slane %v401, 2
        %v403 = vadd.f32 %v401, %v402
        %v404 = vrot.slane %v403, 1
        %v405 = vadd.f32 %v403, %v404
        %v406 = vsel %vm398, %v405, -inf
        %407 = vmax.xlane.f32.xlu0 %v406
        %v408 = vpop.xlane.xlu0 %407
        %vm409 = vcmp.eq.f32.partialorder %v405, %v408
        %v410 = vsel %vm409, 1, 0
        %v411 = vcvt.s32.f32 %v410
        %v412 = vsel %vm398, %v411, 0.0
        %413 = vadd.xlane.f32.xlu0 %v412
        %v414 = vpop.xlane.xlu0 %413
        %v415 = vrcp.pop %v414
        %v416 = vmul.f32 %v411, %v415
        %v417 = vmul.f32 %v258, %v416
        %v418 = vsel %vm398, %v417, 0.0
        %419 = vadd.xlane.f32.xlu0 %v418
        %v420 = vpop.xlane.xlu0 %419
        %v421 = vmul.f32 %v258, %v396
        %v422 = vsel %vm398, %v421, 0.0
        %v423 = vrot.slane %v422, 4
        %v424 = vadd.f32 %v422, %v423
        %v425 = vrot.slane %v424, 2
        %v426 = vadd.f32 %v424, %v425
        %v427 = vrot.slane %v426, 1
        %v428 = vadd.f32 %v426, %v427
        %v429 = vsel %vm398, %v428, -inf
        %430 = vmax.xlane.f32.xlu0 %v429
        %v431 = vpop.xlane.xlu0 %430
        %vm432 = vcmp.eq.f32.partialorder %v428, %v431
        %v433 = vsel %vm432, 1, 0
        %v434 = vcvt.s32.f32 %v433
        %v435 = vsel %vm398, %v434, 0.0
        %436 = vadd.xlane.f32.xlu0 %v435
        %v437 = vpop.xlane.xlu0 %436
        %v438 = vrcp.pop %v437
        %v439 = vmul.f32 %v434, %v438
        %v440 = vmul.f32 %v258, %v439
        %v441 = vsel %vm398, %v440, 0.0
        %442 = vadd.xlane.f32.xlu0 %v441
        %v443 = vpop.xlane.xlu0 %442
        %v444 = vmul.f32 %v420, %v328
        %v445 = vmul.f32 %v420, %v329
        %v446 = vmul.f32 %v443, %v386
        %v447 = vmul.f32 %v443, %v387
        %v448 = vsub.f32 %v444, %v446
        %v449 = vsub.f32 %v445, %v447
        %v450 = vrot.slane %v448, 4
        %v451 = vadd.f32 %v448, %v450
        %v452 = vrot.slane %v451, 2
        %v453 = vadd.f32 %v451, %v452
        %v454 = vrot.slane %v453, 1
        %v455 = vadd.f32 %v453, %v454
        %v456 = vrot.slane %v449, 4
        %v457 = vadd.f32 %v449, %v456
        %v458 = vrot.slane %v457, 2
        %v459 = vadd.f32 %v457, %v458
        %v460 = vrot.slane %v459, 1
        %v461 = vadd.f32 %v459, %v460
        %v462 = vsub.f32 %v420, %v443
        %v463 = vmul.f32 %v455, %v455
        %v464 = vmul.f32 %v461, %v461
        %vm465 = vcmask 1040384
        %v466 = vsel %vm465, %v463, 0.0
        %v467 = vsel %vm465, %v464, 0.0
        %v468 = vadd.f32 %v466, %v467
        %469 = vadd.xlane.f32.xlu0 %v468
        %v470 = vpop.xlane.xlu0 %469
        %v471 = vrot.slane %v470, 4
        %v472 = vadd.f32 %v470, %v471
        %v473 = vrot.slane %v472, 2
        %v474 = vadd.f32 %v472, %v473
        %v475 = vrot.slane %v474, 1
        %v476 = vadd.f32 %v474, %v475
        %s477 = vtos %v476
        %s478 = sadd.f32 %s477, 0.0
        %v479 = vmul.f32 %v462, %v462
        %vm480 = vcmask 7168
        %v481 = vsel %vm480, %v479, 0.0
        %482 = vadd.xlane.f32.xlu0 %v481
        %v483 = vpop.xlane.xlu0 %482
        %v484 = vrot.slane %v483, 4
        %v485 = vadd.f32 %v483, %v484
        %v486 = vrot.slane %v485, 2
        %v487 = vadd.f32 %v485, %v486
        %v488 = vrot.slane %v487, 1
        %v489 = vadd.f32 %v487, %v488
        %s490 = vtos %v489
        %s491 = sadd.f32 %s490, 0.0
        %v492 = vlaneseq
        %v493 = vand.u32 %v492, 127
        %v494 = vlaneseq
        %v495 = vshrl.u32 %v494, 7
        %vm496 = vcmp.eq.s32.totalorder %v495, 0
        %vm497 = vcmp.eq.s32.totalorder %v493, 0
        %vm498 = vmand %vm496, %vm497
        %vm499 = vcmp.eq.s32.totalorder %v493, 1
        %vm500 = vmand %vm496, %vm499
        %v501 = vstv %s491
        %v502 = vsel %vm500, %v501, 0.0
        %v503 = vstv %s478
        %v504 = vsel %vm498, %v503, %v502
        %505 = vst [vmem:[%s245] sm:$0xff] %v504
        %s506 = sand.u32 %s143, 1
        %s507 = scalar_lea.sflag [#allocation4], %s506
        %s508 = sand.u32 %s143, 1
        %s509 = smul.addr %s508, 8
        %s510 = scalar_lea.vmem [#allocation5], %s509
        // Predicated region
        $region45: #{tpu_custom_call.1} parent=39 // pred_check
          %p511 = pneg %p153
        $region46: #{tpu_custom_call.1} parent=39 // pred_check_branch
          %513 = sbr.rel (%p511) target = $region48
        $region47: #{tpu_custom_call.1} parent=39 // pred_region
          %s515 = ssub.s32 128, 128
          %516 = vsyncadd %s507, %s515
          %s517 = smul.addr %s20, 128
          %s518 = scalar_lea.hbm %s5, %s517
          %s520 = sshll.u32 %s510, 4
          %s521 = int_to_ptr.vmem [resolvable:$true] %s520
          %523 = dma.vmem_to_hbm [thread:$0]  %s521, 128, %s518, %s507
        $region48: #{tpu_custom_call.1} parent=39 // pred_fallthru
          _
      $region40: #{tpu_custom_call.1} parent=5 // pred_fallthru
        _
      %p524 = scmp.le.s32.totalorder 2, %s15
      // Predicated region
      $region49: #{tpu_custom_call.1} parent=5 // pred_check
        %p525 = pneg %p524
      $region50: #{tpu_custom_call.1} parent=5 // pred_check_branch
        %527 = sbr.rel (%p525) target = $region52
      $region51: #{tpu_custom_call.1} parent=5 // pred_region
        %s528 = ssub.s32 %s15, 2
        // Predicated region
        $region53: #{tpu_custom_call.1} parent=51 // pred_check
          %p529 = pneg %p159
        $region54: #{tpu_custom_call.1} parent=51 // pred_check_branch
          %531 = sbr.rel (%p529) target = $region56
        $region55: #{tpu_custom_call.1} parent=51 // pred_region
          %s532 = sand.u32 %s144, 1
          %s533 = scalar_lea.sflag [#allocation4], %s532
          %s534 = sand.u32 %s144, 1
          %s535 = smul.addr %s534, 8
          %s536 = scalar_lea.vmem [#allocation5], %s535
          %537 = dma.done %s533, 128
        $region56: #{tpu_custom_call.1} parent=51 // pred_fallthru
          _
      $region52: #{tpu_custom_call.1} parent=5 // pred_fallthru
        _
    $region6: #{tpu_custom_call.1} parent=1 // loop_footer
      %s19 = sadd.s32 1, %s15
    $region7: #{tpu_custom_call.1} parent=1 // loop_footer_branch
      %14 = sbr.rel target = $region3
    $region8: #{tpu_custom_call.1} parent=1 // loop_exit
      _
    %538 = vsyncpa [#allocation3], 1
    %s539 = scalar_lea.sflag [#allocation3], 1
    %540 = vsyncpa %s539, 1
    %541 = vsyncpa [#allocation4], 1
    %s542 = scalar_lea.sflag [#allocation4], 1
    %543 = vsyncpa %s542, 1

</llo_original>
